<compile_context>
chip_gen: v7x
topology: tpu7x:2x2x1
jax: 0.10.0
libtpu: 0.0.40
codegen_flags: <defaults>
</compile_context>

<pallas_src>
import functools

import jax
import jax.numpy as jnp
from jax.experimental import pallas as pl
from jax.experimental.pallas import tpu as pltpu


ROI_QUANT_SCALE = 0.25  # QuantStub(scale=0.25), qint16


def _round_up(x, m):
    return (x + m - 1) // m * m


# ---------------------------------------------------------------------------
# Wrapper-side construction of the separable bilinear interpolation matrices
# (runs in plain XLA, batched over agents).
# ---------------------------------------------------------------------------
def _axis_interp_matrices(start, bin_size, out_size, dim):
    """Batched (A, out_size, dim) bilinear interpolation matrices.

    Mirrors torchvision's bilinear_interpolate() for sampling_ratio=1:
    sample coord = start + (p + 0.5) * bin_size.
    """
    p = jnp.arange(out_size, dtype=jnp.float32)
    coord = start[:, None] + (p[None, :] + 0.5) * bin_size[:, None]      # (A, S)
    valid = jnp.logical_and(coord >= -1.0, coord <= jnp.float32(dim))
    c = jnp.maximum(coord, 0.0)
    low = jnp.floor(c)
    at_edge = low >= jnp.float32(dim - 1)
    low = jnp.where(at_edge, jnp.float32(dim - 1), low)
    high = jnp.where(at_edge, low, low + 1.0)
    c = jnp.where(at_edge, low, c)
    l = c - low                                                          # (A, S)
    h = 1.0 - l

    idx = jnp.arange(dim, dtype=jnp.int32)[None, None, :]                # (1,1,dim)
    low_i = low.astype(jnp.int32)[:, :, None]
    high_i = high.astype(jnp.int32)[:, :, None]
    w = (jnp.where(idx == low_i, h[:, :, None], 0.0)
         + jnp.where(idx == high_i, l[:, :, None], 0.0))
    return w * valid[:, :, None].astype(jnp.float32)                     # (A, S, dim)


# ---------------------------------------------------------------------------
# Pallas kernel: single grid step, both scales, all agents, all channels,
# exactly two MXU matmuls and one lane-dense store.
# ---------------------------------------------------------------------------
def _cropper_kernel(fh_ref, wy_ref, wxb_ref, o_ref, *, num_agents, s_pad):
    """fh_ref : (NH_tot, K_tot)   scale-block-diagonal feature slab
    wy_ref : (A*Sp, NH_tot)    y-interp weights, batch one-hot folded, scales concat
    wxb_ref: (A, K_tot, L_out) per-agent x-interp weights, channel/scale block-diag,
                               zero-padded to 128-lane-multiple L_out
    o_ref  : (A, Sp, L_out)    lane-dense output slab (pad rows/lanes are zeros)
    """
    # Stage 1: y-contraction + batch selection for all agents/scales/channels.
    t1 = jnp.dot(wy_ref[...], fh_ref[...],
                 preferred_element_type=jnp.float32)          # (A*Sp, K_tot)
    # Tile-preserving split of the sublane dim (Sp is a multiple of 8).
    t1 = t1.reshape(num_agents, s_pad, t1.shape[-1])          # (A, Sp, K_tot)
    # Stage 2: x-contraction, batched over agents (one fused MXU sequence).
    out = jnp.einsum('ask,akn->asn', t1, wxb_ref[...],
                     preferred_element_type=jnp.float32)      # (A, Sp, L_out)
    o_ref[...] = out.astype(o_ref.dtype)


# ---------------------------------------------------------------------------
# CropperQAT forward (roi generation / weight building in XLA, sampling in Pallas)
# ---------------------------------------------------------------------------
def cropper_qat_forward(feature_maps, pixel, batch_index, *, size, strides):
    """feature_maps: list of (N, C_i, H_i, W_i); pixel: (A, 2) [x, y];
    batch_index: (A,).  Returns (A, sum(C_i), size, size)."""
    batch_index = batch_index.astype(jnp.int32)
    pixel = pixel.astype(jnp.float32)
    A = pixel.shape[0]
    N = feature_maps[0].shape[0]
    S = size
    Sp = _round_up(S, 8)   # sublane-aligned per-agent row block

    # Batch one-hot (A, N); out-of-range batch_index -> all-zero row -> zero crop.
    onehot_b = (jnp.arange(N, dtype=jnp.int32)[None, :]
                == batch_index[:, None]).astype(jnp.float32)

    fh_list, wy_list, wx_list, chans, widths = [], [], [], [], []
    for f, s in zip(feature_maps, strides):
        f = f.astype(jnp.float32)
        _, C, H, W = f.shape

        # generate_roi
        tl = jnp.maximum(pixel / s - size / 2.0, 0.0)
        br = jnp.maximum(pixel / s + size / 2.0, 0.0)
        roi = jnp.concatenate(
            [batch_index[:, None].astype(jnp.float32), tl, br], axis=-1)
        # QuantStub(scale=0.25, qint16) fake-quant.
        roi_q = jnp.clip(jnp.round(roi / ROI_QUANT_SCALE),
                         -32768, 32767) * ROI_QUANT_SCALE
        x1, y1, x2, y2 = roi_q[:, 1], roi_q[:, 2], roi_q[:, 3], roi_q[:, 4]
        roi_w = jnp.maximum(x2 - x1, 1.0)   # aligned=False -> clamp to >= 1
        roi_h = jnp.maximum(y2 - y1, 1.0)

        wy = _axis_interp_matrices(y1, roi_h / S, S, H)              # (A, S, H)
        wx = _axis_interp_matrices(x1, roi_w / S, S, W)              # (A, S, W)

        # Fold the per-agent batch selection into Wy and pad S -> Sp (zero rows).
        wy_full = (wy[:, :, None, :] * onehot_b[:, None, :, None]
                   ).reshape(A, S, N * H)
        wy_full = jnp.pad(wy_full, ((0, 0), (0, Sp - S), (0, 0)))   # (A, Sp, N*H)

        # Feature NCHW -> lane-dense (N*H, C*W) with fh[b*H+h, c*W+w] = f[b,c,h,w].
        fh = jnp.transpose(f, (0, 2, 1, 3)).reshape(N * H, C * W)

        fh_list.append(fh)
        wy_list.append(wy_full)
        wx_list.append(wx)
        chans.append(C)
        widths.append(W)

    c_tot = sum(chans)
    K_tot = sum(c * w for c, w in zip(chans, widths))
    NH_tot = sum(fh.shape[0] for fh in fh_list)
    L_valid = c_tot * S
    L_out = _round_up(max(L_valid, 128), 128)   # lane-dense, 128-multiple output

    # Scale-block-diagonal feature slab (NH_tot, K_tot).
    fh_bd = jnp.zeros((NH_tot, K_tot), jnp.float32)
    r_off = 0
    k_off = 0
    for fh in fh_list:
        fh_bd = fh_bd.at[r_off:r_off + fh.shape[0],
                         k_off:k_off + fh.shape[1]].set(fh)
        r_off += fh.shape[0]
        k_off += fh.shape[1]

    # Concatenated y-weights (A*Sp, NH_tot); column order matches fh_bd rows.
    wy_cat = jnp.concatenate(wy_list, axis=-1).reshape(A * Sp, NH_tot)

    # Per-agent x-weights: channel/scale block-diagonal, zero-padded to L_out lanes.
    #   wxb[a, K_off_i + c*W_i + w, (C_off_i + c)*S + px] = wx_i[a, px, w]
    wxb_full = jnp.zeros((A, K_tot, L_out), jnp.float32)
    k_off = 0
    c_off = 0
    for wx, C, W in zip(wx_list, chans, widths):
        eye_c = jnp.eye(C, dtype=jnp.float32)
        wxb = jnp.einsum('cd,apw->acwdp', eye_c, wx).reshape(A, C * W, C * S)
        wxb_full = wxb_full.at[:, k_off:k_off + C * W,
                               c_off * S:(c_off + C) * S].set(wxb)
        k_off += C * W
        c_off += C

    kernel = functools.partial(_cropper_kernel, num_agents=A, s_pad=Sp)

    flops = int(2 * (A * Sp) * NH_tot * K_tot + 2 * A * Sp * K_tot * L_out)
    bytes_acc = int(4 * (fh_bd.size + wy_cat.size + wxb_full.size
                         + A * Sp * L_out))
    # Explicit VMEM budget (inputs are double-buffered by default); generous
    # headroom but well under v7x's 64 MiB physical VMEM.
    vmem_limit = int(min(max(8 * bytes_acc, 16 * 1024 * 1024), 64 * 1024 * 1024))

    out = pl.pallas_call(
        kernel,
        out_shape=jax.ShapeDtypeStruct((A, Sp, L_out), jnp.float32),
        grid=(1,),
        in_specs=[
            pl.BlockSpec(fh_bd.shape, lambda i: (0, 0)),
            pl.BlockSpec(wy_cat.shape, lambda i: (0, 0)),
            pl.BlockSpec(wxb_full.shape, lambda i: (0, 0, 0)),
        ],
        out_specs=pl.BlockSpec((A, Sp, L_out), lambda i: (0, 0, 0)),
        compiler_params=pltpu.CompilerParams(
            dimension_semantics=("arbitrary",),
            vmem_limit_bytes=vmem_limit),
        cost_estimate=pl.CostEstimate(
            flops=flops, transcendentals=0, bytes_accessed=bytes_acc),
    )(fh_bd, wy_cat, wxb_full)

    # (A, Sp, L_out) slab -> strip pad rows/lanes -> (A, Ctot, S, S)
    out = out[:, :S, :L_valid].reshape(A, S, c_tot, S)
    return jnp.transpose(out, (0, 2, 1, 3))


# ---------------------------------------------------------------------------
# Pure-JAX reference (independent gather-based bilinear sampling) for checking
# ---------------------------------------------------------------------------
def _roi_align_ref(feature, roi_q_int, batch_index, out_size):
    N, C, H, W = feature.shape
    rois = roi_q_int.astype(jnp.float32) * ROI_QUANT_SCALE

    def one(roi, b):
        x1, y1, x2, y2 = roi[1], roi[2], roi[3], roi[4]
        roi_w = jnp.maximum(x2 - x1, 1.0)
        roi_h = jnp.maximum(y2 - y1, 1.0)
        bw = roi_w / out_size
        bh = roi_h / out_size
        fmap = feature[b]                                        # (C, H, W)

        def sample(y, x):
            valid = (y >= -1.0) & (y <= H) & (x >= -1.0) & (x <= W)
            y = jnp.maximum(y, 0.0)
            x = jnp.maximum(x, 0.0)
            ylo = jnp.floor(y)
            xlo = jnp.floor(x)
            y_edge = ylo >= H - 1
            x_edge = xlo >= W - 1
            ylo = jnp.where(y_edge, float(H - 1), ylo)
            xlo = jnp.where(x_edge, float(W - 1), xlo)
            yhi = jnp.where(y_edge, ylo, ylo + 1.0)
            xhi = jnp.where(x_edge, xlo, xlo + 1.0)
            y = jnp.where(y_edge, ylo, y)
            x = jnp.where(x_edge, xlo, x)
            ly, lx = y - ylo, x - xlo
            hy, hx = 1.0 - ly, 1.0 - lx
            yl, yh = ylo.astype(jnp.int32), yhi.astype(jnp.int32)
            xl, xh = xlo.astype(jnp.int32), xhi.astype(jnp.int32)
            v = (hy * hx * fmap[:, yl, xl] + hy * lx * fmap[:, yl, xh]
                 + ly * hx * fmap[:, yh, xl] + ly * lx * fmap[:, yh, xh])
            return jnp.where(valid, v, 0.0)                      # (C,)

        ys = y1 + (jnp.arange(out_size, dtype=jnp.float32) + 0.5) * bh
        xs = x1 + (jnp.arange(out_size, dtype=jnp.float32) + 0.5) * bw
        grid = jax.vmap(lambda yy: jax.vmap(lambda xx: sample(yy, xx))(xs))(ys)
        return jnp.transpose(grid, (2, 0, 1))                    # (C, S, S)

    return jax.vmap(one)(rois, batch_index)


def _cropper_ref(feature_maps, pixel, batch_index, *, size, strides):
    batch_index = batch_index.astype(jnp.int32)
    pixel = pixel.astype(jnp.float32)
    outs = []
    for f, s in zip(feature_maps, strides):
        tl = jnp.maximum(pixel / s - size / 2.0, 0.0)
        br = jnp.maximum(pixel / s + size / 2.0, 0.0)
        roi = jnp.concatenate(
            [batch_index[:, None].astype(jnp.float32), tl, br], axis=-1)
        roi_q_int = jnp.clip(jnp.round(roi / ROI_QUANT_SCALE),
                             -32768, 32767).astype(jnp.int32)
        outs.append(_roi_align_ref(f.astype(jnp.float32), roi_q_int,
                                   batch_index, size))
    return jnp.concatenate(outs, axis=1)


# ---------------------------------------------------------------------------
if __name__ == "__main__":
    key = jax.random.PRNGKey(0)
    k1, k2, k3 = jax.random.split(key, 3)

    size = 4
    strides = [4, 8]
    N = 2
    agent_num = 6

    # Multi-scale NCHW feature maps (original raster map is 64x64).
    feat0 = jax.random.normal(k1, (N, 4, 16, 16), dtype=jnp.float32)
    feat1 = jax.random.normal(k2, (N, 8, 8, 8), dtype=jnp.float32)
    feature_maps = [feat0, feat1]

    # Agent pixels on the original raster map, (x, y) in [0, 64).
    pixel = jax.random.uniform(k3, (agent_num, 2), minval=0.0, maxval=64.0,
                               dtype=jnp.float32)
    batch_index = jnp.array([0, 0, 1, 1, 0, 1], dtype=jnp.int32)

    out = cropper_qat_forward(feature_maps, pixel, batch_index,
                              size=size, strides=strides)
    out = jax.block_until_ready(out)

    expected_shape = (agent_num, feat0.shape[1] + feat1.shape[1], size, size)
    assert out.shape == expected_shape, (out.shape, expected_shape)

    ref = jax.block_until_ready(
        _cropper_ref(feature_maps, pixel, batch_index,
                     size=size, strides=strides))
    assert jnp.allclose(out, ref, atol=1e-4, rtol=1e-4), \
        float(jnp.max(jnp.abs(out - ref)))

    print("KERNEL_OK")
</pallas_src>

<mosaic_0001>
module attributes {stable_mosaic.version = 11 : i64} {
  func.func @_cropper_kernel(%arg0: i32, %arg1: memref<48x128xf32, #tpu.memory_space<vmem>>, %arg2: memref<48x48xf32, #tpu.memory_space<vmem>>, %arg3: memref<6x128x128xf32, #tpu.memory_space<vmem>>, %arg4: memref<6x8x128xf32, #tpu.memory_space<vmem>>) attributes {dimension_semantics = [#tpu.dimension_semantics<arbitrary>], iteration_bounds = array<i64: 1>, scalar_prefetch = 0 : i64, scratch_operands = 0 : i64, tpu.core_type = #tpu.core_type<tc>, window_params = [{pipeline_mode = #tpu.pipeline_mode<synchronous>, transform_indices = @transform_0, window_bounds = array<i64: 48, 128>}, {pipeline_mode = #tpu.pipeline_mode<synchronous>, transform_indices = @transform_1, window_bounds = array<i64: 48, 48>}, {pipeline_mode = #tpu.pipeline_mode<synchronous>, transform_indices = @transform_2, window_bounds = array<i64: 6, 128, 128>}, {pipeline_mode = #tpu.pipeline_mode<synchronous>, transform_indices = @transform_3, window_bounds = array<i64: 6, 8, 128>}]} {
    %c0 = arith.constant 0 : index
    %c0_0 = arith.constant 0 : index
    %0 = vector.load %arg2[%c0, %c0_0] : memref<48x48xf32, #tpu.memory_space<vmem>>, vector<48x48xf32>
    %c0_1 = arith.constant 0 : index
    %c0_2 = arith.constant 0 : index
    %1 = vector.load %arg1[%c0_1, %c0_2] : memref<48x128xf32, #tpu.memory_space<vmem>>, vector<48x128xf32>
    %cst = arith.constant dense<0.000000e+00> : vector<48x128xf32>
    %2 = tpu.matmul %0, %1, %cst {dimension_numbers = #tpu.dot_dimension_numbers<[1], [0], [0], [1], [0, 0, 1, 1], [], []>} : vector<48x48xf32>, vector<48x128xf32>, vector<48x128xf32> -> vector<48x128xf32>
    %3 = vector.shape_cast %2 : vector<48x128xf32> to vector<6x8x128xf32>
    %c0_3 = arith.constant 0 : index
    %c0_4 = arith.constant 0 : index
    %c0_5 = arith.constant 0 : index
    %4 = vector.load %arg3[%c0_3, %c0_4, %c0_5] : memref<6x128x128xf32, #tpu.memory_space<vmem>>, vector<6x128x128xf32>
    "tpu.trace_start"() <{level = 10 : i32, message = "ask,akn->asn"}> : () -> ()
    %cst_6 = arith.constant dense<0.000000e+00> : vector<6x8x128xf32>
    %5 = tpu.matmul %3, %4, %cst_6 {dimension_numbers = #tpu.dot_dimension_numbers<[2], [1], [1], [2], [0, 0, 0, 1, 1, 2], [0], [0]>} : vector<6x8x128xf32>, vector<6x128x128xf32>, vector<6x8x128xf32> -> vector<6x8x128xf32>
    "tpu.trace_stop"() : () -> ()
    %c0_7 = arith.constant 0 : index
    %c0_8 = arith.constant 0 : index
    %c0_9 = arith.constant 0 : index
    %6 = vector.load %arg4[%c0_7, %c0_8, %c0_9] : memref<6x8x128xf32, #tpu.memory_space<vmem>>, vector<6x8x128xf32>
    tpu.vector_store %arg4[%c0_7, %c0_8, %c0_9], %5 {strides = array<i32>} : memref<6x8x128xf32, #tpu.memory_space<vmem>>, vector<6x8x128xf32>,
    return
  }
  func.func @transform_0(%arg0: i32) -> (i32, i32) {
    %c0_i32 = arith.constant 0 : i32
    %c0_i32_0 = arith.constant 0 : i32
    %c0_i32_1 = arith.constant 0 : i32
    return %c0_i32, %c0_i32_0 : i32, i32
  }
  func.func @transform_1(%arg0: i32) -> (i32, i32) {
    %c0_i32 = arith.constant 0 : i32
    %c0_i32_0 = arith.constant 0 : i32
    %c0_i32_1 = arith.constant 0 : i32
    return %c0_i32, %c0_i32_0 : i32, i32
  }
  func.func @transform_2(%arg0: i32) -> (i32, i32, i32) {
    %c0_i32 = arith.constant 0 : i32
    %c0_i32_0 = arith.constant 0 : i32
    %c0_i32_1 = arith.constant 0 : i32
    %c0_i32_2 = arith.constant 0 : i32
    return %c0_i32, %c0_i32_0, %c0_i32_1 : i32, i32, i32
  }
  func.func @transform_3(%arg0: i32) -> (i32, i32, i32) {
    %c0_i32 = arith.constant 0 : i32
    %c0_i32_0 = arith.constant 0 : i32
    %c0_i32_1 = arith.constant 0 : i32
    %c0_i32_2 = arith.constant 0 : i32
    return %c0_i32, %c0_i32_0, %c0_i32_1 : i32, i32, i32
  }
}

</mosaic_0001>

<llo_original>
// kernel: tpu_custom_call.1
$region0: #{tpu_custom_call.1}
  #allocation0 [shape = 'u32[]', space=smem, size = 0x4, offset = 0x4, fixed_abs, tag = 'smem constant byte address 0x4 - core index']
  #allocation1 [shape = 'u32[144,128]{1,0:T(1,128)}', space=vmem, size = 0x12000, scoped, tag = 'internal scratch']
  %s0 = inlined_call_operand.hbm [shape: f32[48,128], index: 0, kind: input, shape index: {}]
  %s1 = inlined_call_operand.hbm [shape: f32[48,48], index: 1, kind: input, shape index: {}]
  %s2 = inlined_call_operand.hbm [shape: f32[6,128,128], index: 2, kind: input, shape index: {}]
  %s3 = inlined_call_operand.hbm [shape: f32[6,8,128], index: 3, kind: output, shape index: {}]
  %s4 = sld [smem:[#allocation0]]
  $region34: #{tpu_custom_call.1} parent=0
    _
  %s6 = ssub.s32 1, %s4
  %s7 = scalar_select 0, %s6, %s4
  $region1: #{tpu_custom_call.1} parent=0
    #allocation2 [shape = 'u8[24576]{0}', space=vmem, size = 0x6000, scoped, tag = 'input window, operand 0, single buffered']
    #allocation3 [shape = 's32[1]{0}', space=sflag, size = 0x4, scoped, tag = 'scoped memory for tpu_custom_call.1']
    #allocation4 [shape = 's32[1]{0}', space=sflag, size = 0x4, scoped, tag = 'scoped memory for tpu_custom_call.1']
    #allocation5 [shape = 'u8[24576]{0}', space=vmem, size = 0x6000, scoped, tag = 'input window, operand 1, single buffered']
    #allocation6 [shape = 's32[1]{0}', space=sflag, size = 0x4, scoped, tag = 'scoped memory for tpu_custom_call.1']
    #allocation7 [shape = 'u8[393216]{0}', space=vmem, size = 0x60000, scoped, tag = 'input window, operand 2, single buffered']
    #allocation8 [shape = 'u8[24576]{0}', space=vmem, size = 0x6000, scoped, tag = 'output window, operand 0, single buffered']
    %8 = vsyncpa [#allocation3], 0
    %9 = vsyncpa [#allocation6], 0
    %10 = vsyncpa [#allocation4], 0
    // Predicated region
    $region2: #{tpu_custom_call.1} parent=1 // pred_check
      _
    $region3: #{tpu_custom_call.1} parent=1 // pred_check_branch
      %12 = sbr.rel (0) target = $region5
    $region4: #{tpu_custom_call.1} parent=1 // pred_region
      %s14 = ssub.s32 768, 768
      %15 = vsyncadd [#allocation3], %s14
      %s16 = sshll.u32 [#allocation2], 4
      %s17 = int_to_ptr.vmem [resolvable:$true] %s16
      %22 = dma.hbm_to_vmem [thread:$0]  %s0, 768, %s17, [#allocation3], 128, 128, 8
    $region5: #{tpu_custom_call.1} parent=1 // pred_fallthru
      _
    // Predicated region
    $region6: #{tpu_custom_call.1} parent=1 // pred_check
      _
    $region7: #{tpu_custom_call.1} parent=1 // pred_check_branch
      %24 = sbr.rel (0) target = $region9
    $region8: #{tpu_custom_call.1} parent=1 // pred_region
      %s26 = ssub.s32 768, 768
      %27 = vsyncadd [#allocation6], %s26
      %s28 = sshll.u32 [#allocation5], 4
      %s29 = int_to_ptr.vmem [resolvable:$true] %s28
      %34 = dma.hbm_to_vmem [thread:$0]  %s1, 768, %s29, [#allocation6], 128, 128, 8
    $region9: #{tpu_custom_call.1} parent=1 // pred_fallthru
      _
    // Predicated region
    $region10: #{tpu_custom_call.1} parent=1 // pred_check
      _
    $region11: #{tpu_custom_call.1} parent=1 // pred_check_branch
      %36 = sbr.rel (0) target = $region13
    $region12: #{tpu_custom_call.1} parent=1 // pred_region
      %s38 = ssub.s32 12288, 12288
      %39 = vsyncadd [#allocation6], %s38
      %s40 = sshll.u32 [#allocation7], 4
      %s41 = int_to_ptr.vmem [resolvable:$true] %s40
      %46 = dma.hbm_to_vmem [thread:$0]  %s2, 12288, %s41, [#allocation6], 128, 128, 8
    $region13: #{tpu_custom_call.1} parent=1 // pred_fallthru
      _
    // Predicated region
    $region14: #{tpu_custom_call.1} parent=1 // pred_check
      _
    $region15: #{tpu_custom_call.1} parent=1 // pred_check_branch
      %48 = sbr.rel (0) target = $region17
    $region16: #{tpu_custom_call.1} parent=1 // pred_region
      %49 = dma.done [#allocation3], 768
    $region17: #{tpu_custom_call.1} parent=1 // pred_fallthru
      _
    // Predicated region
    $region18: #{tpu_custom_call.1} parent=1 // pred_check
      _
    $region19: #{tpu_custom_call.1} parent=1 // pred_check_branch
      %51 = sbr.rel (0) target = $region21
    $region20: #{tpu_custom_call.1} parent=1 // pred_region
      %52 = dma.done [#allocation6], 768
    $region21: #{tpu_custom_call.1} parent=1 // pred_fallthru
      _
    // Predicated region
    $region22: #{tpu_custom_call.1} parent=1 // pred_check
      _
    $region23: #{tpu_custom_call.1} parent=1 // pred_check_branch
      %54 = sbr.rel (0) target = $region25
    $region24: #{tpu_custom_call.1} parent=1 // pred_region
      %55 = dma.done [#allocation6], 12288
    $region25: #{tpu_custom_call.1} parent=1 // pred_fallthru
      _
    %v56 = vld [vmem:[#allocation5] sm:$0xff]
    %v57 = vld [vmem:[#allocation5 + $0x8] sm:$0xff]
    %v58 = vld [vmem:[#allocation5 + $0x10] sm:$0xff]
    %v59 = vld [vmem:[#allocation5 + $0x18] sm:$0xff]
    %v60 = vld [vmem:[#allocation5 + $0x20] sm:$0xff]
    %v61 = vld [vmem:[#allocation5 + $0x28] sm:$0xff]
    %v62 = vld [vmem:[#allocation2] sm:$0xff]
    %v63 = vld [vmem:[#allocation2 + $0x8] sm:$0xff]
    %v64 = vld [vmem:[#allocation2 + $0x10] sm:$0xff]
    %v65 = vld [vmem:[#allocation2 + $0x18] sm:$0xff]
    %v66 = vld [vmem:[#allocation2 + $0x20] sm:$0xff]
    %v67 = vld [vmem:[#allocation2 + $0x28] sm:$0xff]
    %vm68 = vcmask 392192
    %v70 = vsel %vm68, %v56, 0
    %v73 = vsel %vm68, %v57, 0
    %v76 = vsel %vm68, %v58, 0
    %v79 = vsel %vm68, %v59, 0
    %v82 = vsel %vm68, %v60, 0
    %v85 = vsel %vm68, %v61, 0
    %87 = vmatprep.subr.mxu0 0.0
    %88 = vmatpush1.msra.mxu0 %v62
    %89 = vmatprep.subr.mxu0 0.0
    %90 = vmatpush1.msra.mxu0 %v63
    %91 = vmatprep.subr.mxu0 0.0
    %92 = vmatpush1.msra.mxu0 %v64
    %93 = vmatprep.subr.mxu0 0.0
    %94 = vmatpush1.msra.mxu0 %v65
    %95 = vmatprep.subr.mxu0 0.0
    %96 = vmatpush1.msra.mxu0 %v66
    %97 = vmatprep.subr.mxu0 0.0
    %98 = vmatpush1.msra.mxu0 %v67
    %99 = vmatprep.subr.mxu0 0.0
    %100 = vmatpush1.msra.mxu0 0.0
    %101 = vmatprep.subr.mxu0 0.0
    %102 = vmatpush1.msra.mxu0 0.0
    %103 = vmatprep.subr.mxu0 0.0
    %104 = vmatpush1.msra.mxu0 0.0
    %105 = vmatprep.subr.mxu0 0.0
    %106 = vmatpush1.msra.mxu0 0.0
    %107 = vmatprep.subr.mxu0 0.0
    %108 = vmatpush1.msra.mxu0 0.0
    %109 = vmatprep.subr.mxu0 0.0
    %110 = vmatpush1.msra.mxu0 0.0
    %111 = vmatprep.subr.mxu0 0.0
    %112 = vmatpush1.msra.mxu0 0.0
    %113 = vmatprep.subr.mxu0 0.0
    %114 = vmatpush1.msra.mxu0 0.0
    %115 = vmatprep.subr.mxu0 0.0
    %116 = vmatpush1.msra.mxu0 0.0
    %117 = vmatprep.subr.mxu0 0.0
    %118 = vmatpush1.msra.mxu0 0.0
    %119 = vmatprep.subr.mxu0 0.0
    %120 = vmatpush1.msra.mxu0 0.0
    %121 = vmatprep.subr.mxu0 0.0
    %122 = vmatpush1.msra.mxu0 0.0
    %123 = vmatprep.subr.mxu0 0.0
    %124 = vmatpush1.msra.mxu0 0.0
    %125 = vmatprep.subr.mxu0 0.0
    %126 = vmatpush1.msra.mxu0 0.0
    %127 = vmatprep.subr.mxu0 0.0
    %128 = vmatpush1.msra.mxu0 0.0
    %129 = vmatprep.subr.mxu0 0.0
    %130 = vmatpush1.msra.mxu0 0.0
    %131 = vmatprep.subr.mxu0 0.0
    %132 = vmatpush1.msra.mxu0 0.0
    %133 = vmatprep.subr.mxu0 0.0
    %134 = vmatpush1.msra.mxu0 0.0
    %135 = vmatprep.subr.mxu0 0.0
    %136 = vmatpush1.msra.mxu0 0.0
    %137 = vmatprep.subr.mxu0 0.0
    %138 = vmatpush1.msra.mxu0 0.0
    %139 = vmatprep.subr.mxu0 0.0
    %140 = vmatpush1.msra.mxu0 0.0
    %141 = vmatprep.subr.mxu0 0.0
    %142 = vmatpush1.msra.mxu0 0.0
    %143 = vmatprep.subr.mxu0 0.0
    %144 = vmatpush1.msra.mxu0 0.0
    %145 = vmatprep.subr.mxu0 0.0
    %146 = vmatpush1.msra.mxu0 0.0
    %147 = vmatprep.subr.mxu0 0.0
    %148 = vmatpush1.msra.mxu0 0.0
    %149 = vmatprep.subr.mxu0 0.0
    %150 = vmatpush1.msra.mxu0 0.0
    %151 = vmatprep.mubr.f32.mxu0 0.0
    %152 = vmatmul.mubr.f32.gmra.mrb[0].mxu0 %v70
    %v153 = vpop.f32.mrb[0].mxu0
    %v154 = vadd.f32 0.0, %v153
    %v155 = vpop.f32.mrb[0].mxu0
    %156 = vmatprep.mubr.f32.mxu0 0.0
    %157 = vmatmul.mubr.f32.gmra.mrb[0].mxu0 %v73
    %v158 = vpop.f32.mrb[0].mxu0
    %v159 = vadd.f32 0.0, %v158
    %v160 = vpop.f32.mrb[0].mxu0
    %161 = vmatprep.mubr.f32.mxu0 0.0
    %162 = vmatmul.mubr.f32.gmra.mrb[0].mxu0 %v76
    %v163 = vpop.f32.mrb[0].mxu0
    %v164 = vadd.f32 0.0, %v163
    %v165 = vpop.f32.mrb[0].mxu0
    %166 = vmatprep.mubr.f32.mxu0 0.0
    %167 = vmatmul.mubr.f32.gmra.mrb[0].mxu0 %v79
    %v168 = vpop.f32.mrb[0].mxu0
    %v169 = vadd.f32 0.0, %v168
    %v170 = vpop.f32.mrb[0].mxu0
    %171 = vmatprep.mubr.f32.mxu0 0.0
    %172 = vmatmul.mubr.f32.gmra.mrb[0].mxu0 %v82
    %v173 = vpop.f32.mrb[0].mxu0
    %v174 = vadd.f32 0.0, %v173
    %v175 = vpop.f32.mrb[0].mxu0
    %176 = vmatprep.mubr.f32.mxu0 0.0
    %177 = vmatmul.mubr.f32.gmra.mrb[0].mxu0 %v85
    %v178 = vpop.f32.mrb[0].mxu0
    %v179 = vadd.f32 0.0, %v178
    %v180 = vpop.f32.mrb[0].mxu0
    %181 = vdwg.mxu0
    %v182 = vld [vmem:[#allocation7] sm:$0xff]
    %v183 = vld [vmem:[#allocation7 + $0x8] sm:$0xff]
    %v184 = vld [vmem:[#allocation7 + $0x10] sm:$0xff]
    %v185 = vld [vmem:[#allocation7 + $0x18] sm:$0xff]
    %v186 = vld [vmem:[#allocation7 + $0x20] sm:$0xff]
    %v187 = vld [vmem:[#allocation7 + $0x28] sm:$0xff]
    %v188 = vld [vmem:[#allocation7 + $0x30] sm:$0xff]
    %v189 = vld [vmem:[#allocation7 + $0x38] sm:$0xff]
    %v190 = vld [vmem:[#allocation7 + $0x40] sm:$0xff]
    %v191 = vld [vmem:[#allocation7 + $0x48] sm:$0xff]
    %v192 = vld [vmem:[#allocation7 + $0x50] sm:$0xff]
    %v193 = vld [vmem:[#allocation7 + $0x58] sm:$0xff]
    %v194 = vld [vmem:[#allocation7 + $0x60] sm:$0xff]
    %v195 = vld [vmem:[#allocation7 + $0x68] sm:$0xff]
    %v196 = vld [vmem:[#allocation7 + $0x70] sm:$0xff]
    %v197 = vld [vmem:[#allocation7 + $0x78] sm:$0xff]
    %v198 = vld [vmem:[#allocation7 + $0x80] sm:$0xff]
    %v199 = vld [vmem:[#allocation7 + $0x88] sm:$0xff]
    %v200 = vld [vmem:[#allocation7 + $0x90] sm:$0xff]
    %v201 = vld [vmem:[#allocation7 + $0x98] sm:$0xff]
    %v202 = vld [vmem:[#allocation7 + $0xa0] sm:$0xff]
    %v203 = vld [vmem:[#allocation7 + $0xa8] sm:$0xff]
    %v204 = vld [vmem:[#allocation7 + $0xb0] sm:$0xff]
    %v205 = vld [vmem:[#allocation7 + $0xb8] sm:$0xff]
    %v206 = vld [vmem:[#allocation7 + $0xc0] sm:$0xff]
    %v207 = vld [vmem:[#allocation7 + $0xc8] sm:$0xff]
    %v208 = vld [vmem:[#allocation7 + $0xd0] sm:$0xff]
    %v209 = vld [vmem:[#allocation7 + $0xd8] sm:$0xff]
    %v210 = vld [vmem:[#allocation7 + $0xe0] sm:$0xff]
    %v211 = vld [vmem:[#allocation7 + $0xe8] sm:$0xff]
    %v212 = vld [vmem:[#allocation7 + $0xf0] sm:$0xff]
    %v213 = vld [vmem:[#allocation7 + $0xf8] sm:$0xff]
    %v214 = vld [vmem:[#allocation7 + $0x100] sm:$0xff]
    %v215 = vld [vmem:[#allocation7 + $0x108] sm:$0xff]
    %v216 = vld [vmem:[#allocation7 + $0x110] sm:$0xff]
    %v217 = vld [vmem:[#allocation7 + $0x118] sm:$0xff]
    %v218 = vld [vmem:[#allocation7 + $0x120] sm:$0xff]
    %v219 = vld [vmem:[#allocation7 + $0x128] sm:$0xff]
    %v220 = vld [vmem:[#allocation7 + $0x130] sm:$0xff]
    %v221 = vld [vmem:[#allocation7 + $0x138] sm:$0xff]
    %v222 = vld [vmem:[#allocation7 + $0x140] sm:$0xff]
    %v223 = vld [vmem:[#allocation7 + $0x148] sm:$0xff]
    %v224 = vld [vmem:[#allocation7 + $0x150] sm:$0xff]
    %v225 = vld [vmem:[#allocation7 + $0x158] sm:$0xff]
    %v226 = vld [vmem:[#allocation7 + $0x160] sm:$0xff]
    %v227 = vld [vmem:[#allocation7 + $0x168] sm:$0xff]
    %v228 = vld [vmem:[#allocation7 + $0x170] sm:$0xff]
    %v229 = vld [vmem:[#allocation7 + $0x178] sm:$0xff]
    %v230 = vld [vmem:[#allocation7 + $0x180] sm:$0xff]
    %v231 = vld [vmem:[#allocation7 + $0x188] sm:$0xff]
    %v232 = vld [vmem:[#allocation7 + $0x190] sm:$0xff]
    %v233 = vld [vmem:[#allocation7 + $0x198] sm:$0xff]
    %v234 = vld [vmem:[#allocation7 + $0x1a0] sm:$0xff]
    %v235 = vld [vmem:[#allocation7 + $0x1a8] sm:$0xff]
    %v236 = vld [vmem:[#allocation7 + $0x1b0] sm:$0xff]
    %v237 = vld [vmem:[#allocation7 + $0x1b8] sm:$0xff]
    %v238 = vld [vmem:[#allocation7 + $0x1c0] sm:$0xff]
    %v239 = vld [vmem:[#allocation7 + $0x1c8] sm:$0xff]
    %v240 = vld [vmem:[#allocation7 + $0x1d0] sm:$0xff]
    %v241 = vld [vmem:[#allocation7 + $0x1d8] sm:$0xff]
    %v242 = vld [vmem:[#allocation7 + $0x1e0] sm:$0xff]
    %v243 = vld [vmem:[#allocation7 + $0x1e8] sm:$0xff]
    %v244 = vld [vmem:[#allocation7 + $0x1f0] sm:$0xff]
    %v245 = vld [vmem:[#allocation7 + $0x1f8] sm:$0xff]
    %v246 = vld [vmem:[#allocation7 + $0x200] sm:$0xff]
    %v247 = vld [vmem:[#allocation7 + $0x208] sm:$0xff]
    %v248 = vld [vmem:[#allocation7 + $0x210] sm:$0xff]
    %v249 = vld [vmem:[#allocation7 + $0x218] sm:$0xff]
    %v250 = vld [vmem:[#allocation7 + $0x220] sm:$0xff]
    %v251 = vld [vmem:[#allocation7 + $0x228] sm:$0xff]
    %v252 = vld [vmem:[#allocation7 + $0x230] sm:$0xff]
    %v253 = vld [vmem:[#allocation7 + $0x238] sm:$0xff]
    %v254 = vld [vmem:[#allocation7 + $0x240] sm:$0xff]
    %v255 = vld [vmem:[#allocation7 + $0x248] sm:$0xff]
    %v256 = vld [vmem:[#allocation7 + $0x250] sm:$0xff]
    %v257 = vld [vmem:[#allocation7 + $0x258] sm:$0xff]
    %v258 = vld [vmem:[#allocation7 + $0x260] sm:$0xff]
    %v259 = vld [vmem:[#allocation7 + $0x268] sm:$0xff]
    %v260 = vld [vmem:[#allocation7 + $0x270] sm:$0xff]
    %v261 = vld [vmem:[#allocation7 + $0x278] sm:$0xff]
    %v262 = vld [vmem:[#allocation7 + $0x280] sm:$0xff]
    %v263 = vld [vmem:[#allocation7 + $0x288] sm:$0xff]
    %v264 = vld [vmem:[#allocation7 + $0x290] sm:$0xff]
    %v265 = vld [vmem:[#allocation7 + $0x298] sm:$0xff]
    %v266 = vld [vmem:[#allocation7 + $0x2a0] sm:$0xff]
    %v267 = vld [vmem:[#allocation7 + $0x2a8] sm:$0xff]
    %v268 = vld [vmem:[#allocation7 + $0x2b0] sm:$0xff]
    %v269 = vld [vmem:[#allocation7 + $0x2b8] sm:$0xff]
    %v270 = vld [vmem:[#allocation7 + $0x2c0] sm:$0xff]
    %v271 = vld [vmem:[#allocation7 + $0x2c8] sm:$0xff]
    %v272 = vld [vmem:[#allocation7 + $0x2d0] sm:$0xff]
    %v273 = vld [vmem:[#allocation7 + $0x2d8] sm:$0xff]
    %v274 = vld [vmem:[#allocation7 + $0x2e0] sm:$0xff]
    %v275 = vld [vmem:[#allocation7 + $0x2e8] sm:$0xff]
    %v276 = vld [vmem:[#allocation7 + $0x2f0] sm:$0xff]
    %v277 = vld [vmem:[#allocation7 + $0x2f8] sm:$0xff]
    %278 = vmatprep.subr.mxu0 0.0
    %279 = vmatpush1.msra.mxu0 %v182
    %280 = vmatprep.subr.mxu0 0.0
    %281 = vmatpush1.msra.mxu0 %v183
    %282 = vmatprep.subr.mxu0 0.0
    %283 = vmatpush1.msra.mxu0 %v184
    %284 = vmatprep.subr.mxu0 0.0
    %285 = vmatpush1.msra.mxu0 %v185
    %286 = vmatprep.subr.mxu0 0.0
    %287 = vmatpush1.msra.mxu0 %v186
    %288 = vmatprep.subr.mxu0 0.0
    %289 = vmatpush1.msra.mxu0 %v187
    %290 = vmatprep.subr.mxu0 0.0
    %291 = vmatpush1.msra.mxu0 %v188
    %292 = vmatprep.subr.mxu0 0.0
    %293 = vmatpush1.msra.mxu0 %v189
    %294 = vmatprep.subr.mxu0 0.0
    %295 = vmatpush1.msra.mxu0 %v190
    %296 = vmatprep.subr.mxu0 0.0
    %297 = vmatpush1.msra.mxu0 %v191
    %298 = vmatprep.subr.mxu0 0.0
    %299 = vmatpush1.msra.mxu0 %v192
    %300 = vmatprep.subr.mxu0 0.0
    %301 = vmatpush1.msra.mxu0 %v193
    %302 = vmatprep.subr.mxu0 0.0
    %303 = vmatpush1.msra.mxu0 %v194
    %304 = vmatprep.subr.mxu0 0.0
    %305 = vmatpush1.msra.mxu0 %v195
    %306 = vmatprep.subr.mxu0 0.0
    %307 = vmatpush1.msra.mxu0 %v196
    %308 = vmatprep.subr.mxu0 0.0
    %309 = vmatpush1.msra.mxu0 %v197
    %310 = vmatprep.subr.mxu0 0.0
    %311 = vmatpush1.msra.mxu0 0.0
    %312 = vmatprep.subr.mxu0 0.0
    %313 = vmatpush1.msra.mxu0 0.0
    %314 = vmatprep.subr.mxu0 0.0
    %315 = vmatpush1.msra.mxu0 0.0
    %316 = vmatprep.subr.mxu0 0.0
    %317 = vmatpush1.msra.mxu0 0.0
    %318 = vmatprep.subr.mxu0 0.0
    %319 = vmatpush1.msra.mxu0 0.0
    %320 = vmatprep.subr.mxu0 0.0
    %321 = vmatpush1.msra.mxu0 0.0
    %322 = vmatprep.subr.mxu0 0.0
    %323 = vmatpush1.msra.mxu0 0.0
    %324 = vmatprep.subr.mxu0 0.0
    %325 = vmatpush1.msra.mxu0 0.0
    %326 = vmatprep.subr.mxu0 0.0
    %327 = vmatpush1.msra.mxu0 0.0
    %328 = vmatprep.subr.mxu0 0.0
    %329 = vmatpush1.msra.mxu0 0.0
    %330 = vmatprep.subr.mxu0 0.0
    %331 = vmatpush1.msra.mxu0 0.0
    %332 = vmatprep.subr.mxu0 0.0
    %333 = vmatpush1.msra.mxu0 0.0
    %334 = vmatprep.subr.mxu0 0.0
    %335 = vmatpush1.msra.mxu0 0.0
    %336 = vmatprep.subr.mxu0 0.0
    %337 = vmatpush1.msra.mxu0 0.0
    %338 = vmatprep.subr.mxu0 0.0
    %339 = vmatpush1.msra.mxu0 0.0
    %340 = vmatprep.subr.mxu0 0.0
    %341 = vmatpush1.msra.mxu0 0.0
    %342 = vmatprep.mubr.f32.mxu0 0.0
    %343 = vmatmul.mubr.f32.gmra.mrb[0].mxu0 %v154
    %v344 = vpop.f32.mrb[0].mxu0
    %v345 = vadd.f32 0.0, %v344
    %v346 = vpop.f32.mrb[0].mxu0
    %347 = vdwg.mxu0
    %348 = vmatprep.subr.mxu0 0.0
    %349 = vmatpush1.msra.mxu0 %v198
    %350 = vmatprep.subr.mxu0 0.0
    %351 = vmatpush1.msra.mxu0 %v199
    %352 = vmatprep.subr.mxu0 0.0
    %353 = vmatpush1.msra.mxu0 %v200
    %354 = vmatprep.subr.mxu0 0.0
    %355 = vmatpush1.msra.mxu0 %v201
    %356 = vmatprep.subr.mxu0 0.0
    %357 = vmatpush1.msra.mxu0 %v202
    %358 = vmatprep.subr.mxu0 0.0
    %359 = vmatpush1.msra.mxu0 %v203
    %360 = vmatprep.subr.mxu0 0.0
    %361 = vmatpush1.msra.mxu0 %v204
    %362 = vmatprep.subr.mxu0 0.0
    %363 = vmatpush1.msra.mxu0 %v205
    %364 = vmatprep.subr.mxu0 0.0
    %365 = vmatpush1.msra.mxu0 %v206
    %366 = vmatprep.subr.mxu0 0.0
    %367 = vmatpush1.msra.mxu0 %v207
    %368 = vmatprep.subr.mxu0 0.0
    %369 = vmatpush1.msra.mxu0 %v208
    %370 = vmatprep.subr.mxu0 0.0
    %371 = vmatpush1.msra.mxu0 %v209
    %372 = vmatprep.subr.mxu0 0.0
    %373 = vmatpush1.msra.mxu0 %v210
    %374 = vmatprep.subr.mxu0 0.0
    %375 = vmatpush1.msra.mxu0 %v211
    %376 = vmatprep.subr.mxu0 0.0
    %377 = vmatpush1.msra.mxu0 %v212
    %378 = vmatprep.subr.mxu0 0.0
    %379 = vmatpush1.msra.mxu0 %v213
    %380 = vmatprep.subr.mxu0 0.0
    %381 = vmatpush1.msra.mxu0 0.0
    %382 = vmatprep.subr.mxu0 0.0
    %383 = vmatpush1.msra.mxu0 0.0
    %384 = vmatprep.subr.mxu0 0.0
    %385 = vmatpush1.msra.mxu0 0.0
    %386 = vmatprep.subr.mxu0 0.0
    %387 = vmatpush1.msra.mxu0 0.0
    %388 = vmatprep.subr.mxu0 0.0
    %389 = vmatpush1.msra.mxu0 0.0
    %390 = vmatprep.subr.mxu0 0.0
    %391 = vmatpush1.msra.mxu0 0.0
    %392 = vmatprep.subr.mxu0 0.0
    %393 = vmatpush1.msra.mxu0 0.0
    %394 = vmatprep.subr.mxu0 0.0
    %395 = vmatpush1.msra.mxu0 0.0
    %396 = vmatprep.subr.mxu0 0.0
    %397 = vmatpush1.msra.mxu0 0.0
    %398 = vmatprep.subr.mxu0 0.0
    %399 = vmatpush1.msra.mxu0 0.0
    %400 = vmatprep.subr.mxu0 0.0
    %401 = vmatpush1.msra.mxu0 0.0
    %402 = vmatprep.subr.mxu0 0.0
    %403 = vmatpush1.msra.mxu0 0.0
    %404 = vmatprep.subr.mxu0 0.0
    %405 = vmatpush1.msra.mxu0 0.0
    %406 = vmatprep.subr.mxu0 0.0
    %407 = vmatpush1.msra.mxu0 0.0
    %408 = vmatprep.subr.mxu0 0.0
    %409 = vmatpush1.msra.mxu0 0.0
    %410 = vmatprep.subr.mxu0 0.0
    %411 = vmatpush1.msra.mxu0 0.0
    %412 = vmatprep.mubr.f32.mxu0 0.0
    %413 = vmatmul.mubr.f32.gmra.mrb[0].mxu0 %v159
    %v414 = vpop.f32.mrb[0].mxu0
    %v415 = vadd.f32 0.0, %v414
    %v416 = vpop.f32.mrb[0].mxu0
    %417 = vdwg.mxu0
    %418 = vmatprep.subr.mxu0 0.0
    %419 = vmatpush1.msra.mxu0 %v214
    %420 = vmatprep.subr.mxu0 0.0
    %421 = vmatpush1.msra.mxu0 %v215
    %422 = vmatprep.subr.mxu0 0.0
    %423 = vmatpush1.msra.mxu0 %v216
    %424 = vmatprep.subr.mxu0 0.0
    %425 = vmatpush1.msra.mxu0 %v217
    %426 = vmatprep.subr.mxu0 0.0
    %427 = vmatpush1.msra.mxu0 %v218
    %428 = vmatprep.subr.mxu0 0.0
    %429 = vmatpush1.msra.mxu0 %v219
    %430 = vmatprep.subr.mxu0 0.0
    %431 = vmatpush1.msra.mxu0 %v220
    %432 = vmatprep.subr.mxu0 0.0
    %433 = vmatpush1.msra.mxu0 %v221
    %434 = vmatprep.subr.mxu0 0.0
    %435 = vmatpush1.msra.mxu0 %v222
    %436 = vmatprep.subr.mxu0 0.0
    %437 = vmatpush1.msra.mxu0 %v223
    %438 = vmatprep.subr.mxu0 0.0
    %439 = vmatpush1.msra.mxu0 %v224
    %440 = vmatprep.subr.mxu0 0.0
    %441 = vmatpush1.msra.mxu0 %v225
    %442 = vmatprep.subr.mxu0 0.0
    %443 = vmatpush1.msra.mxu0 %v226
    %444 = vmatprep.subr.mxu0 0.0
    %445 = vmatpush1.msra.mxu0 %v227
    %446 = vmatprep.subr.mxu0 0.0
    %447 = vmatpush1.msra.mxu0 %v228
    %448 = vmatprep.subr.mxu0 0.0
    %449 = vmatpush1.msra.mxu0 %v229
    %450 = vmatprep.subr.mxu0 0.0
    %451 = vmatpush1.msra.mxu0 0.0
    %452 = vmatprep.subr.mxu0 0.0
    %453 = vmatpush1.msra.mxu0 0.0
    %454 = vmatprep.subr.mxu0 0.0
    %455 = vmatpush1.msra.mxu0 0.0
    %456 = vmatprep.subr.mxu0 0.0
    %457 = vmatpush1.msra.mxu0 0.0
    %458 = vmatprep.subr.mxu0 0.0
    %459 = vmatpush1.msra.mxu0 0.0
    %460 = vmatprep.subr.mxu0 0.0
    %461 = vmatpush1.msra.mxu0 0.0
    %462 = vmatprep.subr.mxu0 0.0
    %463 = vmatpush1.msra.mxu0 0.0
    %464 = vmatprep.subr.mxu0 0.0
    %465 = vmatpush1.msra.mxu0 0.0
    %466 = vmatprep.subr.mxu0 0.0
    %467 = vmatpush1.msra.mxu0 0.0
    %468 = vmatprep.subr.mxu0 0.0
    %469 = vmatpush1.msra.mxu0 0.0
    %470 = vmatprep.subr.mxu0 0.0
    %471 = vmatpush1.msra.mxu0 0.0
    %472 = vmatprep.subr.mxu0 0.0
    %473 = vmatpush1.msra.mxu0 0.0
    %474 = vmatprep.subr.mxu0 0.0
    %475 = vmatpush1.msra.mxu0 0.0
    %476 = vmatprep.subr.mxu0 0.0
    %477 = vmatpush1.msra.mxu0 0.0
    %478 = vmatprep.subr.mxu0 0.0
    %479 = vmatpush1.msra.mxu0 0.0
    %480 = vmatprep.subr.mxu0 0.0
    %481 = vmatpush1.msra.mxu0 0.0
    %482 = vmatprep.mubr.f32.mxu0 0.0
    %483 = vmatmul.mubr.f32.gmra.mrb[0].mxu0 %v164
    %v484 = vpop.f32.mrb[0].mxu0
    %v485 = vadd.f32 0.0, %v484
    %v486 = vpop.f32.mrb[0].mxu0
    %487 = vdwg.mxu0
    %488 = vmatprep.subr.mxu0 0.0
    %489 = vmatpush1.msra.mxu0 %v230
    %490 = vmatprep.subr.mxu0 0.0
    %491 = vmatpush1.msra.mxu0 %v231
    %492 = vmatprep.subr.mxu0 0.0
    %493 = vmatpush1.msra.mxu0 %v232
    %494 = vmatprep.subr.mxu0 0.0
    %495 = vmatpush1.msra.mxu0 %v233
    %496 = vmatprep.subr.mxu0 0.0
    %497 = vmatpush1.msra.mxu0 %v234
    %498 = vmatprep.subr.mxu0 0.0
    %499 = vmatpush1.msra.mxu0 %v235
    %500 = vmatprep.subr.mxu0 0.0
    %501 = vmatpush1.msra.mxu0 %v236
    %502 = vmatprep.subr.mxu0 0.0
    %503 = vmatpush1.msra.mxu0 %v237
    %504 = vmatprep.subr.mxu0 0.0
    %505 = vmatpush1.msra.mxu0 %v238
    %506 = vmatprep.subr.mxu0 0.0
    %507 = vmatpush1.msra.mxu0 %v239
    %508 = vmatprep.subr.mxu0 0.0
    %509 = vmatpush1.msra.mxu0 %v240
    %510 = vmatprep.subr.mxu0 0.0
    %511 = vmatpush1.msra.mxu0 %v241
    %512 = vmatprep.subr.mxu0 0.0
    %513 = vmatpush1.msra.mxu0 %v242
    %514 = vmatprep.subr.mxu0 0.0
    %515 = vmatpush1.msra.mxu0 %v243
    %516 = vmatprep.subr.mxu0 0.0
    %517 = vmatpush1.msra.mxu0 %v244
    %518 = vmatprep.subr.mxu0 0.0
    %519 = vmatpush1.msra.mxu0 %v245
    %520 = vmatprep.subr.mxu0 0.0
    %521 = vmatpush1.msra.mxu0 0.0
    %522 = vmatprep.subr.mxu0 0.0
    %523 = vmatpush1.msra.mxu0 0.0
    %524 = vmatprep.subr.mxu0 0.0
    %525 = vmatpush1.msra.mxu0 0.0
    %526 = vmatprep.subr.mxu0 0.0
    %527 = vmatpush1.msra.mxu0 0.0
    %528 = vmatprep.subr.mxu0 0.0
    %529 = vmatpush1.msra.mxu0 0.0
    %530 = vmatprep.subr.mxu0 0.0
    %531 = vmatpush1.msra.mxu0 0.0
    %532 = vmatprep.subr.mxu0 0.0
    %533 = vmatpush1.msra.mxu0 0.0
    %534 = vmatprep.subr.mxu0 0.0
    %535 = vmatpush1.msra.mxu0 0.0
    %536 = vmatprep.subr.mxu0 0.0
    %537 = vmatpush1.msra.mxu0 0.0
    %538 = vmatprep.subr.mxu0 0.0
    %539 = vmatpush1.msra.mxu0 0.0
    %540 = vmatprep.subr.mxu0 0.0
    %541 = vmatpush1.msra.mxu0 0.0
    %542 = vmatprep.subr.mxu0 0.0
    %543 = vmatpush1.msra.mxu0 0.0
    %544 = vmatprep.subr.mxu0 0.0
    %545 = vmatpush1.msra.mxu0 0.0
    %546 = vmatprep.subr.mxu0 0.0
    %547 = vmatpush1.msra.mxu0 0.0
    %548 = vmatprep.subr.mxu0 0.0
    %549 = vmatpush1.msra.mxu0 0.0
    %550 = vmatprep.subr.mxu0 0.0
    %551 = vmatpush1.msra.mxu0 0.0
    %552 = vmatprep.mubr.f32.mxu0 0.0
    %553 = vmatmul.mubr.f32.gmra.mrb[0].mxu0 %v169
    %v554 = vpop.f32.mrb[0].mxu0
    %v555 = vadd.f32 0.0, %v554
    %v556 = vpop.f32.mrb[0].mxu0
    %557 = vdwg.mxu0
    %558 = vmatprep.subr.mxu0 0.0
    %559 = vmatpush1.msra.mxu0 %v246
    %560 = vmatprep.subr.mxu0 0.0
    %561 = vmatpush1.msra.mxu0 %v247
    %562 = vmatprep.subr.mxu0 0.0
    %563 = vmatpush1.msra.mxu0 %v248
    %564 = vmatprep.subr.mxu0 0.0
    %565 = vmatpush1.msra.mxu0 %v249
    %566 = vmatprep.subr.mxu0 0.0
    %567 = vmatpush1.msra.mxu0 %v250
    %568 = vmatprep.subr.mxu0 0.0
    %569 = vmatpush1.msra.mxu0 %v251
    %570 = vmatprep.subr.mxu0 0.0
    %571 = vmatpush1.msra.mxu0 %v252
    %572 = vmatprep.subr.mxu0 0.0
    %573 = vmatpush1.msra.mxu0 %v253
    %574 = vmatprep.subr.mxu0 0.0
    %575 = vmatpush1.msra.mxu0 %v254
    %576 = vmatprep.subr.mxu0 0.0
    %577 = vmatpush1.msra.mxu0 %v255
    %578 = vmatprep.subr.mxu0 0.0
    %579 = vmatpush1.msra.mxu0 %v256
    %580 = vmatprep.subr.mxu0 0.0
    %581 = vmatpush1.msra.mxu0 %v257
    %582 = vmatprep.subr.mxu0 0.0
    %583 = vmatpush1.msra.mxu0 %v258
    %584 = vmatprep.subr.mxu0 0.0
    %585 = vmatpush1.msra.mxu0 %v259
    %586 = vmatprep.subr.mxu0 0.0
    %587 = vmatpush1.msra.mxu0 %v260
    %588 = vmatprep.subr.mxu0 0.0
    %589 = vmatpush1.msra.mxu0 %v261
    %590 = vmatprep.subr.mxu0 0.0
    %591 = vmatpush1.msra.mxu0 0.0
    %592 = vmatprep.subr.mxu0 0.0
    %593 = vmatpush1.msra.mxu0 0.0
    %594 = vmatprep.subr.mxu0 0.0
    %595 = vmatpush1.msra.mxu0 0.0
    %596 = vmatprep.subr.mxu0 0.0
    %597 = vmatpush1.msra.mxu0 0.0
    %598 = vmatprep.subr.mxu0 0.0
    %599 = vmatpush1.msra.mxu0 0.0
    %600 = vmatprep.subr.mxu0 0.0
    %601 = vmatpush1.msra.mxu0 0.0
    %602 = vmatprep.subr.mxu0 0.0
    %603 = vmatpush1.msra.mxu0 0.0
    %604 = vmatprep.subr.mxu0 0.0
    %605 = vmatpush1.msra.mxu0 0.0
    %606 = vmatprep.subr.mxu0 0.0
    %607 = vmatpush1.msra.mxu0 0.0
    %608 = vmatprep.subr.mxu0 0.0
    %609 = vmatpush1.msra.mxu0 0.0
    %610 = vmatprep.subr.mxu0 0.0
    %611 = vmatpush1.msra.mxu0 0.0
    %612 = vmatprep.subr.mxu0 0.0
    %613 = vmatpush1.msra.mxu0 0.0
    %614 = vmatprep.subr.mxu0 0.0
    %615 = vmatpush1.msra.mxu0 0.0
    %616 = vmatprep.subr.mxu0 0.0
    %617 = vmatpush1.msra.mxu0 0.0
    %618 = vmatprep.subr.mxu0 0.0
    %619 = vmatpush1.msra.mxu0 0.0
    %620 = vmatprep.subr.mxu0 0.0
    %621 = vmatpush1.msra.mxu0 0.0
    %622 = vmatprep.mubr.f32.mxu0 0.0
    %623 = vmatmul.mubr.f32.gmra.mrb[0].mxu0 %v174
    %v624 = vpop.f32.mrb[0].mxu0
    %v625 = vadd.f32 0.0, %v624
    %v626 = vpop.f32.mrb[0].mxu0
    %627 = vdwg.mxu0
    %628 = vmatprep.subr.mxu0 0.0
    %629 = vmatpush1.msra.mxu0 %v262
    %630 = vmatprep.subr.mxu0 0.0
    %631 = vmatpush1.msra.mxu0 %v263
    %632 = vmatprep.subr.mxu0 0.0
    %633 = vmatpush1.msra.mxu0 %v264
    %634 = vmatprep.subr.mxu0 0.0
    %635 = vmatpush1.msra.mxu0 %v265
    %636 = vmatprep.subr.mxu0 0.0
    %637 = vmatpush1.msra.mxu0 %v266
    %638 = vmatprep.subr.mxu0 0.0
    %639 = vmatpush1.msra.mxu0 %v267
    %640 = vmatprep.subr.mxu0 0.0
    %641 = vmatpush1.msra.mxu0 %v268
    %642 = vmatprep.subr.mxu0 0.0
    %643 = vmatpush1.msra.mxu0 %v269
    %644 = vmatprep.subr.mxu0 0.0
    %645 = vmatpush1.msra.mxu0 %v270
    %646 = vmatprep.subr.mxu0 0.0
    %647 = vmatpush1.msra.mxu0 %v271
    %648 = vmatprep.subr.mxu0 0.0
    %649 = vmatpush1.msra.mxu0 %v272
    %650 = vmatprep.subr.mxu0 0.0
    %651 = vmatpush1.msra.mxu0 %v273
    %652 = vmatprep.subr.mxu0 0.0
    %653 = vmatpush1.msra.mxu0 %v274
    %654 = vmatprep.subr.mxu0 0.0
    %655 = vmatpush1.msra.mxu0 %v275
    %656 = vmatprep.subr.mxu0 0.0
    %657 = vmatpush1.msra.mxu0 %v276
    %658 = vmatprep.subr.mxu0 0.0
    %659 = vmatpush1.msra.mxu0 %v277
    %660 = vmatprep.subr.mxu0 0.0
    %661 = vmatpush1.msra.mxu0 0.0
    %662 = vmatprep.subr.mxu0 0.0
    %663 = vmatpush1.msra.mxu0 0.0
    %664 = vmatprep.subr.mxu0 0.0
    %665 = vmatpush1.msra.mxu0 0.0
    %666 = vmatprep.subr.mxu0 0.0
    %667 = vmatpush1.msra.mxu0 0.0
    %668 = vmatprep.subr.mxu0 0.0
    %669 = vmatpush1.msra.mxu0 0.0
    %670 = vmatprep.subr.mxu0 0.0
    %671 = vmatpush1.msra.mxu0 0.0
    %672 = vmatprep.subr.mxu0 0.0
    %673 = vmatpush1.msra.mxu0 0.0
    %674 = vmatprep.subr.mxu0 0.0
    %675 = vmatpush1.msra.mxu0 0.0
    %676 = vmatprep.subr.mxu0 0.0
    %677 = vmatpush1.msra.mxu0 0.0
    %678 = vmatprep.subr.mxu0 0.0
    %679 = vmatpush1.msra.mxu0 0.0
    %680 = vmatprep.subr.mxu0 0.0
    %681 = vmatpush1.msra.mxu0 0.0
    %682 = vmatprep.subr.mxu0 0.0
    %683 = vmatpush1.msra.mxu0 0.0
    %684 = vmatprep.subr.mxu0 0.0
    %685 = vmatpush1.msra.mxu0 0.0
    %686 = vmatprep.subr.mxu0 0.0
    %687 = vmatpush1.msra.mxu0 0.0
    %688 = vmatprep.subr.mxu0 0.0
    %689 = vmatpush1.msra.mxu0 0.0
    %690 = vmatprep.subr.mxu0 0.0
    %691 = vmatpush1.msra.mxu0 0.0
    %692 = vmatprep.mubr.f32.mxu0 0.0
    %693 = vmatmul.mubr.f32.gmra.mrb[0].mxu0 %v179
    %v694 = vpop.f32.mrb[0].mxu0
    %v695 = vadd.f32 0.0, %v694
    %v696 = vpop.f32.mrb[0].mxu0
    %697 = vdwg.mxu0
    %698 = vst [vmem:[#allocation8] sm:$0xff] %v345
    %699 = vst [vmem:[#allocation8 + $0x8] sm:$0xff] %v415
    %700 = vst [vmem:[#allocation8 + $0x10] sm:$0xff] %v485
    %701 = vst [vmem:[#allocation8 + $0x18] sm:$0xff] %v555
    %702 = vst [vmem:[#allocation8 + $0x20] sm:$0xff] %v625
    %703 = vst [vmem:[#allocation8 + $0x28] sm:$0xff] %v695
    // Predicated region
    $region26: #{tpu_custom_call.1} parent=1 // pred_check
      _
    $region27: #{tpu_custom_call.1} parent=1 // pred_check_branch
      %705 = sbr.rel (0) target = $region29
    $region28: #{tpu_custom_call.1} parent=1 // pred_region
      %s707 = ssub.s32 768, 768
      %708 = vsyncadd [#allocation4], %s707
      %s709 = sshll.u32 [#allocation8], 4
      %s710 = int_to_ptr.vmem [resolvable:$true] %s709
      %715 = dma.vmem_to_hbm [thread:$0]  %s710, 768, %s3, [#allocation4], 128, 128, 8
    $region29: #{tpu_custom_call.1} parent=1 // pred_fallthru
      _
    // Predicated region
    $region30: #{tpu_custom_call.1} parent=1 // pred_check
      _
    $region31: #{tpu_custom_call.1} parent=1 // pred_check_branch
      %717 = sbr.rel (0) target = $region33
    $region32: #{tpu_custom_call.1} parent=1 // pred_region
      %718 = dma.done [#allocation4], 768
    $region33: #{tpu_custom_call.1} parent=1 // pred_fallthru
      _
    %719 = vsyncpa [#allocation3], 1
    %720 = vsyncpa [#allocation6], 1
    %721 = vsyncpa [#allocation4], 1

</llo_original>
